<compile_context>
chip_gen: v6e
topology: v6e:2x2x1
jax: 0.10.0
libtpu: 0.0.40
codegen_flags: <defaults>
</compile_context>

<pallas_src>
import math

import jax
import jax.numpy as jnp
from jax.experimental import pallas as pl
from jax.experimental.pallas import tpu as pltpu

_IN, _HID, _OUT = 4, 8, 1
_GROUP = 128 // _IN          # 32 batch elements packed per 128-lane row


def _round_up(n, m):
    return ((n + m - 1) // m) * m


def _cdiv(a, b):
    return -(-a // b)


def _mlp_kernel(x_ref, w1_ref, b1_ref, w2_ref, b2_ref, w3_ref, b3_ref, o_ref):
    # x_ref: (TR, 128) packed batch; w1e: (128, 256); w2e: (256, 256);
    # w3e: (256, 32); biases: (1, N) f32.  All tiles lane-dense.
    cd = w1_ref.dtype                                    # compute dtype (f32 / bf16)
    x = x_ref[...].astype(cd)
    a1 = jnp.dot(x, w1_ref[...], preferred_element_type=jnp.float32) + b1_ref[...]
    h1 = jnp.tanh(a1.astype(cd))                         # (TR, 256) lane-dense EUP
    a2 = jnp.dot(h1, w2_ref[...], preferred_element_type=jnp.float32) + b2_ref[...]
    h2 = jnp.tanh(a2.astype(cd))                         # (TR, 256)
    z = jnp.dot(h2, w3_ref[...], preferred_element_type=jnp.float32) + b3_ref[...]
    # sigmoid(z) == 0.5 * (1 + tanh(0.5 * z)): single EUP op, VALU ops are free.
    o_ref[...] = (0.5 + 0.5 * jnp.tanh(0.5 * z)).astype(o_ref.dtype)


def net_simple_forward(x, params, *, batch_tile=65536, compute_dtype=jnp.float32):
    """x: (B, 4) float32.  Returns (B, 1) float32 (sigmoid output)."""
    w1, b1, w2, b2, w3, b3 = params      # PyTorch (out, in) weights, (out,) biases
    B, F = x.shape
    assert F == _IN

    # ---- pack batch onto lanes: (B, 4) -> (B/32, 128); contiguous reshape is free.
    Bp = _round_up(B, _GROUP)
    if Bp != B:                          # only copies when B % 32 != 0
        x = jnp.pad(x, ((0, Bp - B), (0, 0)))
    Rp = Bp // _GROUP
    xp = x.reshape(Rp, _GROUP * _IN)

    # ---- row tile: multiple of 8 sublanes (or full extent).  Cap at 64K batch
    # elements (2048 rows) so double-buffered tiles + intermediates stay well
    # under v5e's scoped-VMEM limit; the "half" term guarantees >= 2 grid steps
    # for B >= 4096 so the parallel axis actually shards on v7x's two TCs.
    bt = _round_up(min(max(int(batch_tile), 256), 65536), 256)
    tr_max = bt // _GROUP
    half = _round_up(_cdiv(Rp, 2), 8)
    TR = min(tr_max, max(64, half))
    if TR >= Rp:
        TR = Rp                          # single full-extent block (always legal)
    grid = _cdiv(Rp, TR)

    # ---- block-diagonal expanded weights: one lane-dense MXU matmul applies a
    # layer to all 32 packed batch slots at once.  Tiny (<= 256 KiB), VMEM
    # resident across grid steps via constant index_maps.
    eye = jnp.eye(_GROUP, dtype=jnp.float32)
    w1e = jnp.kron(eye, w1.T).astype(compute_dtype)               # (128, 256)
    w2e = jnp.kron(eye, w2.T).astype(compute_dtype)               # (256, 256)
    w3e = jnp.kron(eye, w3.T).astype(compute_dtype)               # (256,  32)
    b1e = jnp.tile(b1, _GROUP).reshape(1, -1).astype(jnp.float32)  # (1, 256)
    b2e = jnp.tile(b2, _GROUP).reshape(1, -1).astype(jnp.float32)  # (1, 256)
    b3e = jnp.tile(b3, _GROUP).reshape(1, -1).astype(jnp.float32)  # (1, 32)

    const = lambda a: pl.BlockSpec(a.shape, lambda i: (0, 0))

    cost = pl.CostEstimate(
        flops=2 * Rp * (128 * 256 + 256 * 256 + 256 * 32),
        transcendentals=Rp * (256 + 256 + 32),
        bytes_accessed=Rp * (_GROUP * _IN + _GROUP) * 4
        + 4 * (w1e.size + w2e.size + w3e.size + b1e.size + b2e.size + b3e.size),
    )

    out_packed = pl.pallas_call(
        _mlp_kernel,
        out_shape=jax.ShapeDtypeStruct((Rp, _GROUP), jnp.float32),
        grid_spec=pltpu.PrefetchScalarGridSpec(
            num_scalar_prefetch=0,
            grid=(grid,),
            in_specs=[
                pl.BlockSpec((TR, _GROUP * _IN), lambda i: (i, 0)),  # x tile
                const(w1e), const(b1e),
                const(w2e), const(b2e),
                const(w3e), const(b3e),
            ],
            out_specs=pl.BlockSpec((TR, _GROUP), lambda i: (i, 0)),
        ),
        compiler_params=pltpu.CompilerParams(
            dimension_semantics=("parallel",),   # batch tiles independent (v7x 2 TCs)
            vmem_limit_bytes=32 * 1024 * 1024,   # covers v5e's 16 MiB default
        ),
        cost_estimate=cost,
    )(xp, w1e, b1e, w2e, b2e, w3e, b3e)

    out = out_packed.reshape(Bp, 1)              # free contiguous reshape
    return out if Bp == B else out[:B]


def xavier_uniform(key, out_features, in_features):
    # Matches torch.nn.init.xavier_uniform_ (gain=1): U(-a, a),
    # a = sqrt(6 / (fan_in + fan_out)).  Stored in PyTorch (out, in) order.
    a = math.sqrt(6.0 / (in_features + out_features))
    return jax.random.uniform(
        key, (out_features, in_features), jnp.float32, minval=-a, maxval=a
    )


def init_params(key):
    k1, k2, k3 = jax.random.split(key, 3)
    w1 = xavier_uniform(k1, _HID, _IN)
    b1 = jnp.zeros((_HID,), jnp.float32)
    w2 = xavier_uniform(k2, _HID, _HID)
    b2 = jnp.zeros((_HID,), jnp.float32)
    w3 = xavier_uniform(k3, _OUT, _HID)
    b3 = jnp.zeros((_OUT,), jnp.float32)
    return (w1, b1, w2, b2, w3, b3)


if __name__ == "__main__":
    key = jax.random.PRNGKey(0)
    pkey, xkey = jax.random.split(key)

    params = init_params(pkey)
    x = jax.random.normal(xkey, (8, _IN), jnp.float32)   # batch=8, features=4

    out = net_simple_forward(x, params)
    jax.block_until_ready(out)

    # Pure-JAX reference (standard batch-major math, PyTorch weight order).
    w1, b1, w2, b2, w3, b3 = params
    ref = jax.nn.sigmoid(
        jnp.tanh(jnp.tanh(x @ w1.T + b1) @ w2.T + b2) @ w3.T + b3
    )
    assert out.shape == (8, 1)
    assert jnp.allclose(out, ref, atol=1e-4), "mismatch vs reference"

    print("KERNEL_OK")
</pallas_src>

<mosaic_0001>
module attributes {stable_mosaic.version = 11 : i64} {
  func.func @_mlp_kernel(%arg0: i32, %arg1: memref<1x128xf32, #tpu.memory_space<vmem>>, %arg2: memref<128x256xf32, #tpu.memory_space<vmem>>, %arg3: memref<1x256xf32, #tpu.memory_space<vmem>>, %arg4: memref<256x256xf32, #tpu.memory_space<vmem>>, %arg5: memref<1x256xf32, #tpu.memory_space<vmem>>, %arg6: memref<256x32xf32, #tpu.memory_space<vmem>>, %arg7: memref<1x32xf32, #tpu.memory_space<vmem>>, %arg8: memref<1x32xf32, #tpu.memory_space<vmem>>) attributes {dimension_semantics = [#tpu.dimension_semantics<parallel>], iteration_bounds = array<i64: 1>, scalar_prefetch = 0 : i64, scratch_operands = 0 : i64, tpu.core_type = #tpu.core_type<tc>, window_params = [{transform_indices = @transform_0, window_bounds = array<i64: 1, 128>}, {pipeline_mode = #tpu.pipeline_mode<synchronous>, transform_indices = @transform_1, window_bounds = array<i64: 128, 256>}, {pipeline_mode = #tpu.pipeline_mode<synchronous>, transform_indices = @transform_2, window_bounds = array<i64: 1, 256>}, {pipeline_mode = #tpu.pipeline_mode<synchronous>, transform_indices = @transform_3, window_bounds = array<i64: 256, 256>}, {pipeline_mode = #tpu.pipeline_mode<synchronous>, transform_indices = @transform_4, window_bounds = array<i64: 1, 256>}, {pipeline_mode = #tpu.pipeline_mode<synchronous>, transform_indices = @transform_5, window_bounds = array<i64: 256, 32>}, {pipeline_mode = #tpu.pipeline_mode<synchronous>, transform_indices = @transform_6, window_bounds = array<i64: 1, 32>}, {transform_indices = @transform_7, window_bounds = array<i64: 1, 32>}]} {
    %c0 = arith.constant 0 : index
    %c0_0 = arith.constant 0 : index
    %0 = vector.load %arg1[%c0, %c0_0] : memref<1x128xf32, #tpu.memory_space<vmem>>, vector<1x128xf32>
    %c0_1 = arith.constant 0 : index
    %c0_2 = arith.constant 0 : index
    %1 = vector.load %arg2[%c0_1, %c0_2] : memref<128x256xf32, #tpu.memory_space<vmem>>, vector<128x256xf32>
    %cst = arith.constant dense<0.000000e+00> : vector<1x256xf32>
    %2 = tpu.matmul %0, %1, %cst {dimension_numbers = #tpu.dot_dimension_numbers<[1], [0], [0], [1], [0, 0, 1, 1], [], []>} : vector<1x128xf32>, vector<128x256xf32>, vector<1x256xf32> -> vector<1x256xf32>
    %c0_3 = arith.constant 0 : index
    %c0_4 = arith.constant 0 : index
    %3 = vector.load %arg3[%c0_3, %c0_4] : memref<1x256xf32, #tpu.memory_space<vmem>>, vector<1x256xf32>
    %4 = arith.addf %2, %3 : vector<1x256xf32>
    %5 = math.tanh %4 : vector<1x256xf32>
    %c0_5 = arith.constant 0 : index
    %c0_6 = arith.constant 0 : index
    %6 = vector.load %arg4[%c0_5, %c0_6] : memref<256x256xf32, #tpu.memory_space<vmem>>, vector<256x256xf32>
    %cst_7 = arith.constant dense<0.000000e+00> : vector<1x256xf32>
    %7 = tpu.matmul %5, %6, %cst_7 {dimension_numbers = #tpu.dot_dimension_numbers<[1], [0], [0], [1], [0, 0, 1, 1], [], []>} : vector<1x256xf32>, vector<256x256xf32>, vector<1x256xf32> -> vector<1x256xf32>
    %c0_8 = arith.constant 0 : index
    %c0_9 = arith.constant 0 : index
    %8 = vector.load %arg5[%c0_8, %c0_9] : memref<1x256xf32, #tpu.memory_space<vmem>>, vector<1x256xf32>
    %9 = arith.addf %7, %8 : vector<1x256xf32>
    %10 = math.tanh %9 : vector<1x256xf32>
    %c0_10 = arith.constant 0 : index
    %c0_11 = arith.constant 0 : index
    %11 = vector.load %arg6[%c0_10, %c0_11] : memref<256x32xf32, #tpu.memory_space<vmem>>, vector<256x32xf32>
    %cst_12 = arith.constant dense<0.000000e+00> : vector<1x32xf32>
    %12 = tpu.matmul %10, %11, %cst_12 {dimension_numbers = #tpu.dot_dimension_numbers<[1], [0], [0], [1], [0, 0, 1, 1], [], []>} : vector<1x256xf32>, vector<256x32xf32>, vector<1x32xf32> -> vector<1x32xf32>
    %c0_13 = arith.constant 0 : index
    %c0_14 = arith.constant 0 : index
    %13 = vector.load %arg7[%c0_13, %c0_14] : memref<1x32xf32, #tpu.memory_space<vmem>>, vector<1x32xf32>
    %14 = arith.addf %12, %13 : vector<1x32xf32>
    %cst_15 = arith.constant 5.000000e-01 : f32
    %15 = vector.broadcast %cst_15 : f32 to vector<1x32xf32>
    %16 = arith.mulf %15, %14 : vector<1x32xf32>
    %17 = math.tanh %16 : vector<1x32xf32>
    %cst_16 = arith.constant 5.000000e-01 : f32
    %18 = vector.broadcast %cst_16 : f32 to vector<1x32xf32>
    %19 = arith.mulf %18, %17 : vector<1x32xf32>
    %cst_17 = arith.constant 5.000000e-01 : f32
    %20 = vector.broadcast %cst_17 : f32 to vector<1x32xf32>
    %21 = arith.addf %20, %19 : vector<1x32xf32>
    %c0_18 = arith.constant 0 : index
    %c0_19 = arith.constant 0 : index
    %22 = vector.load %arg8[%c0_18, %c0_19] : memref<1x32xf32, #tpu.memory_space<vmem>>, vector<1x32xf32>
    tpu.vector_store %arg8[%c0_18, %c0_19], %21 {strides = array<i32>} : memref<1x32xf32, #tpu.memory_space<vmem>>, vector<1x32xf32>,
    return
  }
  func.func @transform_0(%arg0: i32) -> (i32, i32) {
    %c0_i32 = arith.constant 0 : i32
    %c0_i32_0 = arith.constant 0 : i32
    return %arg0, %c0_i32 : i32, i32
  }
  func.func @transform_1(%arg0: i32) -> (i32, i32) {
    %c0_i32 = arith.constant 0 : i32
    %c0_i32_0 = arith.constant 0 : i32
    %c0_i32_1 = arith.constant 0 : i32
    return %c0_i32, %c0_i32_0 : i32, i32
  }
  func.func @transform_2(%arg0: i32) -> (i32, i32) {
    %c0_i32 = arith.constant 0 : i32
    %c0_i32_0 = arith.constant 0 : i32
    %c0_i32_1 = arith.constant 0 : i32
    return %c0_i32, %c0_i32_0 : i32, i32
  }
  func.func @transform_3(%arg0: i32) -> (i32, i32) {
    %c0_i32 = arith.constant 0 : i32
    %c0_i32_0 = arith.constant 0 : i32
    %c0_i32_1 = arith.constant 0 : i32
    return %c0_i32, %c0_i32_0 : i32, i32
  }
  func.func @transform_4(%arg0: i32) -> (i32, i32) {
    %c0_i32 = arith.constant 0 : i32
    %c0_i32_0 = arith.constant 0 : i32
    %c0_i32_1 = arith.constant 0 : i32
    return %c0_i32, %c0_i32_0 : i32, i32
  }
  func.func @transform_5(%arg0: i32) -> (i32, i32) {
    %c0_i32 = arith.constant 0 : i32
    %c0_i32_0 = arith.constant 0 : i32
    %c0_i32_1 = arith.constant 0 : i32
    return %c0_i32, %c0_i32_0 : i32, i32
  }
  func.func @transform_6(%arg0: i32) -> (i32, i32) {
    %c0_i32 = arith.constant 0 : i32
    %c0_i32_0 = arith.constant 0 : i32
    %c0_i32_1 = arith.constant 0 : i32
    return %c0_i32, %c0_i32_0 : i32, i32
  }
  func.func @transform_7(%arg0: i32) -> (i32, i32) {
    %c0_i32 = arith.constant 0 : i32
    %c0_i32_0 = arith.constant 0 : i32
    return %arg0, %c0_i32 : i32, i32
  }
}

</mosaic_0001>

<llo_original>
// kernel: tpu_custom_call.1
$region0: #{tpu_custom_call.1}
  #allocation0 [shape = 'u32[]', space=smem, size = 0x4, offset = 0x4, fixed_abs, tag = 'smem constant byte address 0x4 - core index']
  #allocation1 [shape = 'u32[144,128]{1,0:T(1,128)}', space=vmem, size = 0x12000, scoped, tag = 'internal scratch']
  %s0 = inlined_call_operand.vmem [shape: f32[1,128], index: 0, kind: input, shape index: {}]
  %s1 = inlined_call_operand.vmem [shape: f32[128,256], index: 1, kind: input, shape index: {}]
  %s2 = inlined_call_operand.vmem [shape: f32[1,256], index: 2, kind: input, shape index: {}]
  %s3 = inlined_call_operand.hbm [shape: f32[256,256], index: 3, kind: input, shape index: {}]
  %s4 = inlined_call_operand.vmem [shape: f32[1,256], index: 4, kind: input, shape index: {}]
  %s5 = inlined_call_operand.vmem [shape: f32[256,32], index: 5, kind: input, shape index: {}]
  %s6 = inlined_call_operand.vmem [shape: f32[1,32], index: 6, kind: input, shape index: {}]
  %s7 = inlined_call_operand.hbm [shape: f32[1,32], index: 7, kind: output, shape index: {}]
  %s8 = sld [smem:[#allocation0]]
  $region42: #{tpu_custom_call.1} parent=0
    _
  %s10 = ssub.s32 1, %s8
  %s11 = scalar_select 0, %s10, %s8
  $region1: #{tpu_custom_call.1} parent=0
    #allocation2 [shape = 'u8[262144]{0}', space=vmem, size = 0x40000, scoped, tag = 'input window, operand 3, single buffered']
    #allocation3 [shape = 's32[1]{0}', space=sflag, size = 0x4, scoped, tag = 'scoped memory for tpu_custom_call.1']
    #allocation4 [shape = 's32[1]{0}', space=sflag, size = 0x4, scoped, tag = 'scoped memory for tpu_custom_call.1']
    #allocation5 [shape = 'u8[512]{0}', space=vmem, size = 0x400, scoped, tag = 'output window, operand 0, single buffered']
    %12 = vsyncpa [#allocation3], 0
    %13 = vsyncpa [#allocation4], 0
    // Predicated region
    $region2: #{tpu_custom_call.1} parent=1 // pred_check
      _
    $region3: #{tpu_custom_call.1} parent=1 // pred_check_branch
      %15 = sbr.rel (0) target = $region5
    $region4: #{tpu_custom_call.1} parent=1 // pred_region
      _
    $region5: #{tpu_custom_call.1} parent=1 // pred_fallthru
      _
    // Predicated region
    $region6: #{tpu_custom_call.1} parent=1 // pred_check
      _
    $region7: #{tpu_custom_call.1} parent=1 // pred_check_branch
      %17 = sbr.rel (0) target = $region9
    $region8: #{tpu_custom_call.1} parent=1 // pred_region
      _
    $region9: #{tpu_custom_call.1} parent=1 // pred_fallthru
      _
    // Predicated region
    $region10: #{tpu_custom_call.1} parent=1 // pred_check
      _
    $region11: #{tpu_custom_call.1} parent=1 // pred_check_branch
      %19 = sbr.rel (0) target = $region13
    $region12: #{tpu_custom_call.1} parent=1 // pred_region
      _
    $region13: #{tpu_custom_call.1} parent=1 // pred_fallthru
      _
    // Predicated region
    $region14: #{tpu_custom_call.1} parent=1 // pred_check
      _
    $region15: #{tpu_custom_call.1} parent=1 // pred_check_branch
      %21 = sbr.rel (0) target = $region17
    $region16: #{tpu_custom_call.1} parent=1 // pred_region
      %s23 = ssub.s32 8192, 8192
      %24 = vsyncadd [#allocation3], %s23
      %s25 = sshll.u32 [#allocation2], 4
      %s26 = int_to_ptr.vmem [resolvable:$true] %s25
      %31 = dma.hbm_to_vmem [thread:$0]  %s3, 8192, %s26, [#allocation3], 256, 256, 16
    $region17: #{tpu_custom_call.1} parent=1 // pred_fallthru
      _
    // Predicated region
    $region18: #{tpu_custom_call.1} parent=1 // pred_check
      _
    $region19: #{tpu_custom_call.1} parent=1 // pred_check_branch
      %33 = sbr.rel (0) target = $region21
    $region20: #{tpu_custom_call.1} parent=1 // pred_region
      _
    $region21: #{tpu_custom_call.1} parent=1 // pred_fallthru
      _
    // Predicated region
    $region22: #{tpu_custom_call.1} parent=1 // pred_check
      _
    $region23: #{tpu_custom_call.1} parent=1 // pred_check_branch
      %35 = sbr.rel (0) target = $region25
    $region24: #{tpu_custom_call.1} parent=1 // pred_region
      _
    $region25: #{tpu_custom_call.1} parent=1 // pred_fallthru
      _
    // Predicated region
    $region26: #{tpu_custom_call.1} parent=1 // pred_check
      _
    $region27: #{tpu_custom_call.1} parent=1 // pred_check_branch
      %37 = sbr.rel (0) target = $region29
    $region28: #{tpu_custom_call.1} parent=1 // pred_region
      _
    $region29: #{tpu_custom_call.1} parent=1 // pred_fallthru
      _
    // Predicated region
    $region30: #{tpu_custom_call.1} parent=1 // pred_check
      _
    $region31: #{tpu_custom_call.1} parent=1 // pred_check_branch
      %39 = sbr.rel (0) target = $region33
    $region32: #{tpu_custom_call.1} parent=1 // pred_region
      %40 = dma.done [#allocation3], 8192
    $region33: #{tpu_custom_call.1} parent=1 // pred_fallthru
      _
    %v41 = vld [vmem:[%s0] sm:$0x1]
    %v42 = vld [vmem:[%s1] sm:$0xff]
    %v43 = vld [vmem:[%s1 + $0x8] sm:$0xff]
    %v44 = vld [vmem:[%s1 + $0x10] sm:$0xff]
    %v45 = vld [vmem:[%s1 + $0x18] sm:$0xff]
    %v46 = vld [vmem:[%s1 + $0x20] sm:$0xff]
    %v47 = vld [vmem:[%s1 + $0x28] sm:$0xff]
    %v48 = vld [vmem:[%s1 + $0x30] sm:$0xff]
    %v49 = vld [vmem:[%s1 + $0x38] sm:$0xff]
    %v50 = vld [vmem:[%s1 + $0x40] sm:$0xff]
    %v51 = vld [vmem:[%s1 + $0x48] sm:$0xff]
    %v52 = vld [vmem:[%s1 + $0x50] sm:$0xff]
    %v53 = vld [vmem:[%s1 + $0x58] sm:$0xff]
    %v54 = vld [vmem:[%s1 + $0x60] sm:$0xff]
    %v55 = vld [vmem:[%s1 + $0x68] sm:$0xff]
    %v56 = vld [vmem:[%s1 + $0x70] sm:$0xff]
    %v57 = vld [vmem:[%s1 + $0x78] sm:$0xff]
    %v58 = vld [vmem:[%s1 + $0x80] sm:$0xff]
    %v59 = vld [vmem:[%s1 + $0x88] sm:$0xff]
    %v60 = vld [vmem:[%s1 + $0x90] sm:$0xff]
    %v61 = vld [vmem:[%s1 + $0x98] sm:$0xff]
    %v62 = vld [vmem:[%s1 + $0xa0] sm:$0xff]
    %v63 = vld [vmem:[%s1 + $0xa8] sm:$0xff]
    %v64 = vld [vmem:[%s1 + $0xb0] sm:$0xff]
    %v65 = vld [vmem:[%s1 + $0xb8] sm:$0xff]
    %v66 = vld [vmem:[%s1 + $0xc0] sm:$0xff]
    %v67 = vld [vmem:[%s1 + $0xc8] sm:$0xff]
    %v68 = vld [vmem:[%s1 + $0xd0] sm:$0xff]
    %v69 = vld [vmem:[%s1 + $0xd8] sm:$0xff]
    %v70 = vld [vmem:[%s1 + $0xe0] sm:$0xff]
    %v71 = vld [vmem:[%s1 + $0xe8] sm:$0xff]
    %v72 = vld [vmem:[%s1 + $0xf0] sm:$0xff]
    %v73 = vld [vmem:[%s1 + $0xf8] sm:$0xff]
    %v74 = vld [vmem:[%s2] sm:$0x3]
    %v76 = vlaneseq
    %v77 = vshrl.u32 %v76, 7
    %v78 = vsub.s32 0, %v77
    %v79 = vrot.slane %v74, %v78
    %v80 = vlaneseq
    %v81 = vshrl.u32 %v80, 7
    %v82 = vsub.s32 1, %v81
    %v83 = vrot.slane %v74, %v82
    %86 = vmatprep.subr.mxu0 %v73
    %87 = vmatpush1.msra.mxu0 %v72
    %88 = vmatprep.subr.mxu0 %v71
    %89 = vmatpush1.msra.mxu0 %v70
    %90 = vmatprep.subr.mxu0 %v69
    %91 = vmatpush1.msra.mxu0 %v68
    %92 = vmatprep.subr.mxu0 %v67
    %93 = vmatpush1.msra.mxu0 %v66
    %94 = vmatprep.subr.mxu0 %v65
    %95 = vmatpush1.msra.mxu0 %v64
    %96 = vmatprep.subr.mxu0 %v63
    %97 = vmatpush1.msra.mxu0 %v62
    %98 = vmatprep.subr.mxu0 %v61
    %99 = vmatpush1.msra.mxu0 %v60
    %100 = vmatprep.subr.mxu0 %v59
    %101 = vmatpush1.msra.mxu0 %v58
    %102 = vmatprep.subr.mxu0 %v57
    %103 = vmatpush1.msra.mxu0 %v56
    %104 = vmatprep.subr.mxu0 %v55
    %105 = vmatpush1.msra.mxu0 %v54
    %106 = vmatprep.subr.mxu0 %v53
    %107 = vmatpush1.msra.mxu0 %v52
    %108 = vmatprep.subr.mxu0 %v51
    %109 = vmatpush1.msra.mxu0 %v50
    %110 = vmatprep.subr.mxu0 %v49
    %111 = vmatpush1.msra.mxu0 %v48
    %112 = vmatprep.subr.mxu0 %v47
    %113 = vmatpush1.msra.mxu0 %v46
    %114 = vmatprep.subr.mxu0 %v45
    %115 = vmatpush1.msra.mxu0 %v44
    %116 = vmatprep.subr.mxu0 %v43
    %117 = vmatpush1.msra.mxu0 %v42
    %118 = vmatprep.subr.mxu0 0.0
    %119 = vmatpush2.msra.mxu0 0.0
    %120 = vmatprep.subr.mxu0 0.0
    %121 = vmatpush2.msra.mxu0 0.0
    %122 = vmatprep.subr.mxu0 0.0
    %123 = vmatpush2.msra.mxu0 0.0
    %124 = vmatprep.subr.mxu0 0.0
    %125 = vmatpush2.msra.mxu0 0.0
    %126 = vmatprep.subr.mxu0 0.0
    %127 = vmatpush2.msra.mxu0 0.0
    %128 = vmatprep.subr.mxu0 0.0
    %129 = vmatpush2.msra.mxu0 0.0
    %130 = vmatprep.subr.mxu0 0.0
    %131 = vmatpush2.msra.mxu0 0.0
    %132 = vmatprep.subr.mxu0 0.0
    %133 = vmatpush2.msra.mxu0 0.0
    %134 = vmatprep.subr.mxu0 0.0
    %135 = vmatpush2.msra.mxu0 0.0
    %136 = vmatprep.subr.mxu0 0.0
    %137 = vmatpush2.msra.mxu0 0.0
    %138 = vmatprep.subr.mxu0 0.0
    %139 = vmatpush2.msra.mxu0 0.0
    %140 = vmatprep.subr.mxu0 0.0
    %141 = vmatpush2.msra.mxu0 0.0
    %142 = vmatprep.subr.mxu0 0.0
    %143 = vmatpush2.msra.mxu0 0.0
    %144 = vmatprep.subr.mxu0 0.0
    %145 = vmatpush2.msra.mxu0 0.0
    %146 = vmatprep.subr.mxu0 0.0
    %147 = vmatpush2.msra.mxu0 0.0
    %148 = vmatprep.subr.mxu0 0.0
    %149 = vmatpush2.msra.mxu0 0.0
    %150 = vmatprep.mubr.f32.mxu0 0.0
    %151 = vmatmul.mubr.f32.gmra.mxu0 %v41
    %v152 = vpop.f32.mrf.mxu0
    %v153 = vadd.f32 %v79, %v152
    %v154 = vpop.f32.mrf.mxu0
    %v155 = vadd.f32 %v83, %v154
    %156 = vdwg.mxu0
    %v157 = vtanh.pop %v153
    %v158 = vtanh.pop %v155
    %v159 = vld [vmem:[#allocation2] sm:$0xff]
    %v160 = vld [vmem:[#allocation2 + $0x8] sm:$0xff]
    %v161 = vld [vmem:[#allocation2 + $0x10] sm:$0xff]
    %v162 = vld [vmem:[#allocation2 + $0x18] sm:$0xff]
    %v163 = vld [vmem:[#allocation2 + $0x20] sm:$0xff]
    %v164 = vld [vmem:[#allocation2 + $0x28] sm:$0xff]
    %v165 = vld [vmem:[#allocation2 + $0x30] sm:$0xff]
    %v166 = vld [vmem:[#allocation2 + $0x38] sm:$0xff]
    %v167 = vld [vmem:[#allocation2 + $0x40] sm:$0xff]
    %v168 = vld [vmem:[#allocation2 + $0x48] sm:$0xff]
    %v169 = vld [vmem:[#allocation2 + $0x50] sm:$0xff]
    %v170 = vld [vmem:[#allocation2 + $0x58] sm:$0xff]
    %v171 = vld [vmem:[#allocation2 + $0x60] sm:$0xff]
    %v172 = vld [vmem:[#allocation2 + $0x68] sm:$0xff]
    %v173 = vld [vmem:[#allocation2 + $0x70] sm:$0xff]
    %v174 = vld [vmem:[#allocation2 + $0x78] sm:$0xff]
    %v175 = vld [vmem:[#allocation2 + $0x80] sm:$0xff]
    %v176 = vld [vmem:[#allocation2 + $0x88] sm:$0xff]
    %v177 = vld [vmem:[#allocation2 + $0x90] sm:$0xff]
    %v178 = vld [vmem:[#allocation2 + $0x98] sm:$0xff]
    %v179 = vld [vmem:[#allocation2 + $0xa0] sm:$0xff]
    %v180 = vld [vmem:[#allocation2 + $0xa8] sm:$0xff]
    %v181 = vld [vmem:[#allocation2 + $0xb0] sm:$0xff]
    %v182 = vld [vmem:[#allocation2 + $0xb8] sm:$0xff]
    %v183 = vld [vmem:[#allocation2 + $0xc0] sm:$0xff]
    %v184 = vld [vmem:[#allocation2 + $0xc8] sm:$0xff]
    %v185 = vld [vmem:[#allocation2 + $0xd0] sm:$0xff]
    %v186 = vld [vmem:[#allocation2 + $0xd8] sm:$0xff]
    %v187 = vld [vmem:[#allocation2 + $0xe0] sm:$0xff]
    %v188 = vld [vmem:[#allocation2 + $0xe8] sm:$0xff]
    %v189 = vld [vmem:[#allocation2 + $0xf0] sm:$0xff]
    %v190 = vld [vmem:[#allocation2 + $0xf8] sm:$0xff]
    %v191 = vld [vmem:[#allocation2 + $0x100] sm:$0xff]
    %v192 = vld [vmem:[#allocation2 + $0x108] sm:$0xff]
    %v193 = vld [vmem:[#allocation2 + $0x110] sm:$0xff]
    %v194 = vld [vmem:[#allocation2 + $0x118] sm:$0xff]
    %v195 = vld [vmem:[#allocation2 + $0x120] sm:$0xff]
    %v196 = vld [vmem:[#allocation2 + $0x128] sm:$0xff]
    %v197 = vld [vmem:[#allocation2 + $0x130] sm:$0xff]
    %v198 = vld [vmem:[#allocation2 + $0x138] sm:$0xff]
    %v199 = vld [vmem:[#allocation2 + $0x140] sm:$0xff]
    %v200 = vld [vmem:[#allocation2 + $0x148] sm:$0xff]
    %v201 = vld [vmem:[#allocation2 + $0x150] sm:$0xff]
    %v202 = vld [vmem:[#allocation2 + $0x158] sm:$0xff]
    %v203 = vld [vmem:[#allocation2 + $0x160] sm:$0xff]
    %v204 = vld [vmem:[#allocation2 + $0x168] sm:$0xff]
    %v205 = vld [vmem:[#allocation2 + $0x170] sm:$0xff]
    %v206 = vld [vmem:[#allocation2 + $0x178] sm:$0xff]
    %v207 = vld [vmem:[#allocation2 + $0x180] sm:$0xff]
    %v208 = vld [vmem:[#allocation2 + $0x188] sm:$0xff]
    %v209 = vld [vmem:[#allocation2 + $0x190] sm:$0xff]
    %v210 = vld [vmem:[#allocation2 + $0x198] sm:$0xff]
    %v211 = vld [vmem:[#allocation2 + $0x1a0] sm:$0xff]
    %v212 = vld [vmem:[#allocation2 + $0x1a8] sm:$0xff]
    %v213 = vld [vmem:[#allocation2 + $0x1b0] sm:$0xff]
    %v214 = vld [vmem:[#allocation2 + $0x1b8] sm:$0xff]
    %v215 = vld [vmem:[#allocation2 + $0x1c0] sm:$0xff]
    %v216 = vld [vmem:[#allocation2 + $0x1c8] sm:$0xff]
    %v217 = vld [vmem:[#allocation2 + $0x1d0] sm:$0xff]
    %v218 = vld [vmem:[#allocation2 + $0x1d8] sm:$0xff]
    %v219 = vld [vmem:[#allocation2 + $0x1e0] sm:$0xff]
    %v220 = vld [vmem:[#allocation2 + $0x1e8] sm:$0xff]
    %v221 = vld [vmem:[#allocation2 + $0x1f0] sm:$0xff]
    %v222 = vld [vmem:[#allocation2 + $0x1f8] sm:$0xff]
    %v223 = vld [vmem:[%s4] sm:$0x3]
    %v225 = vlaneseq
    %v226 = vshrl.u32 %v225, 7
    %v227 = vsub.s32 0, %v226
    %v228 = vrot.slane %v223, %v227
    %v229 = vlaneseq
    %v230 = vshrl.u32 %v229, 7
    %v231 = vsub.s32 1, %v230
    %v232 = vrot.slane %v223, %v231
    %235 = vmatprep.subr.mxu0 %v190
    %236 = vmatpush1.msra.mxu0 %v189
    %237 = vmatprep.subr.mxu0 %v188
    %238 = vmatpush1.msra.mxu0 %v187
    %239 = vmatprep.subr.mxu0 %v186
    %240 = vmatpush1.msra.mxu0 %v185
    %241 = vmatprep.subr.mxu0 %v184
    %242 = vmatpush1.msra.mxu0 %v183
    %243 = vmatprep.subr.mxu0 %v182
    %244 = vmatpush1.msra.mxu0 %v181
    %245 = vmatprep.subr.mxu0 %v180
    %246 = vmatpush1.msra.mxu0 %v179
    %247 = vmatprep.subr.mxu0 %v178
    %248 = vmatpush1.msra.mxu0 %v177
    %249 = vmatprep.subr.mxu0 %v176
    %250 = vmatpush1.msra.mxu0 %v175
    %251 = vmatprep.subr.mxu0 %v174
    %252 = vmatpush1.msra.mxu0 %v173
    %253 = vmatprep.subr.mxu0 %v172
    %254 = vmatpush1.msra.mxu0 %v171
    %255 = vmatprep.subr.mxu0 %v170
    %256 = vmatpush1.msra.mxu0 %v169
    %257 = vmatprep.subr.mxu0 %v168
    %258 = vmatpush1.msra.mxu0 %v167
    %259 = vmatprep.subr.mxu0 %v166
    %260 = vmatpush1.msra.mxu0 %v165
    %261 = vmatprep.subr.mxu0 %v164
    %262 = vmatpush1.msra.mxu0 %v163
    %263 = vmatprep.subr.mxu0 %v162
    %264 = vmatpush1.msra.mxu0 %v161
    %265 = vmatprep.subr.mxu0 %v160
    %266 = vmatpush1.msra.mxu0 %v159
    %267 = vmatprep.subr.mxu0 %v222
    %268 = vmatpush2.msra.mxu0 %v221
    %269 = vmatprep.subr.mxu0 %v220
    %270 = vmatpush2.msra.mxu0 %v219
    %271 = vmatprep.subr.mxu0 %v218
    %272 = vmatpush2.msra.mxu0 %v217
    %273 = vmatprep.subr.mxu0 %v216
    %274 = vmatpush2.msra.mxu0 %v215
    %275 = vmatprep.subr.mxu0 %v214
    %276 = vmatpush2.msra.mxu0 %v213
    %277 = vmatprep.subr.mxu0 %v212
    %278 = vmatpush2.msra.mxu0 %v211
    %279 = vmatprep.subr.mxu0 %v210
    %280 = vmatpush2.msra.mxu0 %v209
    %281 = vmatprep.subr.mxu0 %v208
    %282 = vmatpush2.msra.mxu0 %v207
    %283 = vmatprep.subr.mxu0 %v206
    %284 = vmatpush2.msra.mxu0 %v205
    %285 = vmatprep.subr.mxu0 %v204
    %286 = vmatpush2.msra.mxu0 %v203
    %287 = vmatprep.subr.mxu0 %v202
    %288 = vmatpush2.msra.mxu0 %v201
    %289 = vmatprep.subr.mxu0 %v200
    %290 = vmatpush2.msra.mxu0 %v199
    %291 = vmatprep.subr.mxu0 %v198
    %292 = vmatpush2.msra.mxu0 %v197
    %293 = vmatprep.subr.mxu0 %v196
    %294 = vmatpush2.msra.mxu0 %v195
    %295 = vmatprep.subr.mxu0 %v194
    %296 = vmatpush2.msra.mxu0 %v193
    %297 = vmatprep.subr.mxu0 %v192
    %298 = vmatpush2.msra.mxu0 %v191
    %299 = vmatprep.mubr.f32.mxu0 %v158
    %300 = vmatmul.mubr.f32.gmra.mxu0 %v157
    %v301 = vpop.f32.mrf.mxu0
    %v302 = vadd.f32 %v228, %v301
    %v303 = vpop.f32.mrf.mxu0
    %v304 = vadd.f32 %v232, %v303
    %305 = vdwg.mxu0
    %v306 = vtanh.pop %v302
    %v307 = vtanh.pop %v304
    %v308 = vld [vmem:[%s5] sm:$0xff]
    %v309 = vld [vmem:[%s5 + $0x8] sm:$0xff]
    %v310 = vld [vmem:[%s5 + $0x10] sm:$0xff]
    %v311 = vld [vmem:[%s5 + $0x18] sm:$0xff]
    %v312 = vld [vmem:[%s5 + $0x20] sm:$0xff]
    %v313 = vld [vmem:[%s5 + $0x28] sm:$0xff]
    %v314 = vld [vmem:[%s5 + $0x30] sm:$0xff]
    %v315 = vld [vmem:[%s5 + $0x38] sm:$0xff]
    %v316 = vld [vmem:[%s5 + $0x40] sm:$0xff]
    %v317 = vld [vmem:[%s5 + $0x48] sm:$0xff]
    %v318 = vld [vmem:[%s5 + $0x50] sm:$0xff]
    %v319 = vld [vmem:[%s5 + $0x58] sm:$0xff]
    %v320 = vld [vmem:[%s5 + $0x60] sm:$0xff]
    %v321 = vld [vmem:[%s5 + $0x68] sm:$0xff]
    %v322 = vld [vmem:[%s5 + $0x70] sm:$0xff]
    %v323 = vld [vmem:[%s5 + $0x78] sm:$0xff]
    %v324 = vld [vmem:[%s5 + $0x80] sm:$0xff]
    %v325 = vld [vmem:[%s5 + $0x88] sm:$0xff]
    %v326 = vld [vmem:[%s5 + $0x90] sm:$0xff]
    %v327 = vld [vmem:[%s5 + $0x98] sm:$0xff]
    %v328 = vld [vmem:[%s5 + $0xa0] sm:$0xff]
    %v329 = vld [vmem:[%s5 + $0xa8] sm:$0xff]
    %v330 = vld [vmem:[%s5 + $0xb0] sm:$0xff]
    %v331 = vld [vmem:[%s5 + $0xb8] sm:$0xff]
    %v332 = vld [vmem:[%s5 + $0xc0] sm:$0xff]
    %v333 = vld [vmem:[%s5 + $0xc8] sm:$0xff]
    %v334 = vld [vmem:[%s5 + $0xd0] sm:$0xff]
    %v335 = vld [vmem:[%s5 + $0xd8] sm:$0xff]
    %v336 = vld [vmem:[%s5 + $0xe0] sm:$0xff]
    %v337 = vld [vmem:[%s5 + $0xe8] sm:$0xff]
    %v338 = vld [vmem:[%s5 + $0xf0] sm:$0xff]
    %v339 = vld [vmem:[%s5 + $0xf8] sm:$0xff]
    %v340 = vld [vmem:[%s6] sm:$0x1]
    %341 = vmatprep.subr.mxu0 0.0
    %342 = vmatpush1.msra.mxu0 %v323
    %343 = vmatprep.subr.mxu0 0.0
    %344 = vmatpush1.msra.mxu0 %v322
    %345 = vmatprep.subr.mxu0 0.0
    %346 = vmatpush1.msra.mxu0 %v321
    %347 = vmatprep.subr.mxu0 0.0
    %348 = vmatpush1.msra.mxu0 %v320
    %349 = vmatprep.subr.mxu0 0.0
    %350 = vmatpush1.msra.mxu0 %v319
    %351 = vmatprep.subr.mxu0 0.0
    %352 = vmatpush1.msra.mxu0 %v318
    %353 = vmatprep.subr.mxu0 0.0
    %354 = vmatpush1.msra.mxu0 %v317
    %355 = vmatprep.subr.mxu0 0.0
    %356 = vmatpush1.msra.mxu0 %v316
    %357 = vmatprep.subr.mxu0 0.0
    %358 = vmatpush1.msra.mxu0 %v315
    %359 = vmatprep.subr.mxu0 0.0
    %360 = vmatpush1.msra.mxu0 %v314
    %361 = vmatprep.subr.mxu0 0.0
    %362 = vmatpush1.msra.mxu0 %v313
    %363 = vmatprep.subr.mxu0 0.0
    %364 = vmatpush1.msra.mxu0 %v312
    %365 = vmatprep.subr.mxu0 0.0
    %366 = vmatpush1.msra.mxu0 %v311
    %367 = vmatprep.subr.mxu0 0.0
    %368 = vmatpush1.msra.mxu0 %v310
    %369 = vmatprep.subr.mxu0 0.0
    %370 = vmatpush1.msra.mxu0 %v309
    %371 = vmatprep.subr.mxu0 0.0
    %372 = vmatpush1.msra.mxu0 %v308
    %373 = vmatprep.subr.mxu0 0.0
    %374 = vmatpush2.msra.mxu0 %v339
    %375 = vmatprep.subr.mxu0 0.0
    %376 = vmatpush2.msra.mxu0 %v338
    %377 = vmatprep.subr.mxu0 0.0
    %378 = vmatpush2.msra.mxu0 %v337
    %379 = vmatprep.subr.mxu0 0.0
    %380 = vmatpush2.msra.mxu0 %v336
    %381 = vmatprep.subr.mxu0 0.0
    %382 = vmatpush2.msra.mxu0 %v335
    %383 = vmatprep.subr.mxu0 0.0
    %384 = vmatpush2.msra.mxu0 %v334
    %385 = vmatprep.subr.mxu0 0.0
    %386 = vmatpush2.msra.mxu0 %v333
    %387 = vmatprep.subr.mxu0 0.0
    %388 = vmatpush2.msra.mxu0 %v332
    %389 = vmatprep.subr.mxu0 0.0
    %390 = vmatpush2.msra.mxu0 %v331
    %391 = vmatprep.subr.mxu0 0.0
    %392 = vmatpush2.msra.mxu0 %v330
    %393 = vmatprep.subr.mxu0 0.0
    %394 = vmatpush2.msra.mxu0 %v329
    %395 = vmatprep.subr.mxu0 0.0
    %396 = vmatpush2.msra.mxu0 %v328
    %397 = vmatprep.subr.mxu0 0.0
    %398 = vmatpush2.msra.mxu0 %v327
    %399 = vmatprep.subr.mxu0 0.0
    %400 = vmatpush2.msra.mxu0 %v326
    %401 = vmatprep.subr.mxu0 0.0
    %402 = vmatpush2.msra.mxu0 %v325
    %403 = vmatprep.subr.mxu0 0.0
    %404 = vmatpush2.msra.mxu0 %v324
    %405 = vmatprep.mubr.f32.mxu0 %v307
    %406 = vmatmul.mubr.f32.gmra.mxu0 %v306
    %v407 = vpop.f32.mrf.mxu0
    %v408 = vadd.f32 %v340, %v407
    %v409 = vpop.f32.mrf.mxu0
    %410 = vdwg.mxu0
    %v411 = vmul.f32 %v408, 0.5
    %v412 = vtanh.pop %v411
    %v413 = vmul.f32 %v412, 0.5
    %v414 = vadd.f32 %v413, 0.5
    %vm415 = vcmask 253952
    %416 = vst.msk [vmem:[#allocation5] sm:$0x1] %vm415, %v414
    // Predicated region
    $region34: #{tpu_custom_call.1} parent=1 // pred_check
      _
    $region35: #{tpu_custom_call.1} parent=1 // pred_check_branch
      %418 = sbr.rel (0) target = $region37
    $region36: #{tpu_custom_call.1} parent=1 // pred_region
      %s420 = ssub.s32 16, 16
      %421 = vsyncadd [#allocation4], %s420
      %s423 = sshll.u32 [#allocation5], 4
      %s424 = int_to_ptr.vmem [resolvable:$true] %s423
      %426 = dma.vmem_to_hbm [thread:$0]  %s424, 16, %s7, [#allocation4]
    $region37: #{tpu_custom_call.1} parent=1 // pred_fallthru
      _
    // Predicated region
    $region38: #{tpu_custom_call.1} parent=1 // pred_check
      _
    $region39: #{tpu_custom_call.1} parent=1 // pred_check_branch
      %428 = sbr.rel (0) target = $region41
    $region40: #{tpu_custom_call.1} parent=1 // pred_region
      %429 = dma.done [#allocation4], 16
    $region41: #{tpu_custom_call.1} parent=1 // pred_fallthru
      _
    %430 = vsyncpa [#allocation3], 1
    %431 = vsyncpa [#allocation4], 1

</llo_original>
